<compile_context>
chip_gen: v7x
topology: tpu7x:2x2x1
jax: 0.10.0
libtpu: 0.0.40
codegen_flags: <defaults>
</compile_context>

<pallas_src>
import functools

import jax
import jax.numpy as jnp
from jax.experimental import pallas as pl
from jax.experimental.pallas import tpu as pltpu


# ----------------------------------------------------------------------------
# helpers
# ----------------------------------------------------------------------------
def _round_up(x, m):
    return (x + m - 1) // m * m


def _tile(padded_dim, max_blocks):
    """Largest tile (multiple of 128, <= 128*max_blocks) dividing padded_dim."""
    q = padded_dim // 128
    for d in range(min(max_blocks, q), 0, -1):
        if q % d == 0:
            return 128 * d
    return 128


def _pick_tiles(Mp, Np, Kp):
    """Adaptive matmul tiles: big K (fit-to-VMEM), wide N, >=2 parallel blocks."""
    tm = _tile(Mp, 2)                                  # <= 256 rows
    max_tn_blocks = 8                                  # <= 1024 cols
    if Mp // tm < 2 and Np >= 256:
        # keep >= 2 blocks in the parallel (i, j) plane for v7x dual TensorCore
        max_tn_blocks = max(1, min(max_tn_blocks, (Np // 128) // 2))
    tn = _tile(Np, max_tn_blocks)
    # single K step whenever the bf16 weight panel per step stays <= ~4 MiB
    max_tk_blocks = max(1, (4 * 1024 * 1024 // 2) // (tn * 128))
    tk = _tile(Kp, max_tk_blocks)
    return tm, tn, tk


def _weight_spec(tk, tn, buffers):
    """Weights are the dominant DMA stream -> deeper buffering when useful."""
    if buffers > 2:
        try:
            return pl.BlockSpec((tk, tn), lambda i, j, k: (k, j),
                                pipeline_mode=pl.Buffered(buffers))
        except (TypeError, AttributeError):   # older jax without pipeline_mode
            pass
    return pl.BlockSpec((tk, tn), lambda i, j, k: (k, j))


# ----------------------------------------------------------------------------
# Pallas kernels
# ----------------------------------------------------------------------------
def _matmul_kernel(*refs, has_bias, with_stats, single_k):
    a_ref, b_ref = refs[0], refs[1]
    idx = 2
    bias_ref = None
    if has_bias:
        bias_ref = refs[idx]
        idx += 1
    o_ref = refs[idx]
    idx += 1
    stats_ref = None
    if with_stats:
        stats_ref = refs[idx]
        idx += 1
    acc_ref = None if single_k else refs[idx]

    def epilogue(y):
        if has_bias:
            y = y + bias_ref[...]
        o_ref[...] = y.astype(o_ref.dtype)
        if with_stats:
            s = jnp.sum(y, axis=0, keepdims=True)            # (1, tn)
            ss = jnp.sum(y * y, axis=0, keepdims=True)        # (1, tn)
            rows = jax.lax.broadcasted_iota(jnp.int32, stats_ref.shape, 0)
            stats_ref[...] = (jnp.where(rows == 0, s, 0.0)
                              + jnp.where(rows == 1, ss, 0.0))

    if single_k:
        epilogue(jnp.dot(a_ref[...], b_ref[...],
                         preferred_element_type=jnp.float32))
    else:
        k = pl.program_id(2)

        @pl.when(k == 0)
        def _():
            acc_ref[...] = jnp.zeros_like(acc_ref)

        acc_ref[...] += jnp.dot(a_ref[...], b_ref[...],
                                preferred_element_type=jnp.float32)

        @pl.when(k == pl.num_programs(2) - 1)
        def _():
            epilogue(acc_ref[...])


def pallas_matmul(a, b, bias=None, with_stats=False, out_dtype=jnp.bfloat16):
    """a: (M, K), b: (K, N) (bf16 operands), f32 accumulate, bf16 HBM output.

    Returns out (M, N), plus per-channel (sum, sumsq) over rows when
    with_stats=True (computed in the matmul epilogue from the f32 accumulator).
    """
    M, K = a.shape
    K2, Nc = b.shape
    assert K == K2
    assert bias is None or not with_stats   # stats assume zero-padded rows stay 0
    Mp, Kp, Np = _round_up(M, 128), _round_up(K, 128), _round_up(Nc, 128)
    tm, tn, tk = _pick_tiles(Mp, Np, Kp)
    single_k = (tk == Kp)

    if a.dtype != jnp.bfloat16:
        a = a.astype(jnp.bfloat16)
    if (M, K) != (Mp, Kp):
        a = jnp.pad(a, ((0, Mp - M), (0, Kp - K)))
    if b.dtype != jnp.bfloat16:
        b = b.astype(jnp.bfloat16)
    if (K, Nc) != (Kp, Np):
        b = jnp.pad(b, ((0, Kp - K), (0, Np - Nc)))

    n_b_blocks = (Np // tn) * (Kp // tk)
    inputs = [a, b]
    in_specs = [pl.BlockSpec((tm, tk), lambda i, j, k: (i, k)),
                _weight_spec(tk, tn, 3 if n_b_blocks >= 3 else 2)]
    if bias is not None:
        bias_p = jnp.zeros((1, Np), jnp.float32).at[0, :Nc].set(
            bias.astype(jnp.float32))
        inputs.append(bias_p)
        in_specs.append(pl.BlockSpec((1, tn), lambda i, j, k: (0, j)))

    out_shapes = [jax.ShapeDtypeStruct((Mp, Np), out_dtype)]
    out_specs = [pl.BlockSpec((tm, tn), lambda i, j, k: (i, j))]
    if with_stats:
        out_shapes.append(
            jax.ShapeDtypeStruct((8 * (Mp // tm), Np), jnp.float32))
        out_specs.append(pl.BlockSpec((8, tn), lambda i, j, k: (i, j)))

    scratch = [] if single_k else [pltpu.VMEM((tm, tn), jnp.float32)]

    res = pl.pallas_call(
        functools.partial(_matmul_kernel, has_bias=bias is not None,
                          with_stats=with_stats, single_k=single_k),
        out_shape=tuple(out_shapes),
        grid_spec=pltpu.PrefetchScalarGridSpec(
            num_scalar_prefetch=0,
            grid=(Mp // tm, Np // tn, Kp // tk),
            in_specs=in_specs,
            out_specs=tuple(out_specs),
            scratch_shapes=scratch,
        ),
        compiler_params=pltpu.CompilerParams(
            dimension_semantics=("parallel", "parallel", "arbitrary"),
            vmem_limit_bytes=48 * 1024 * 1024),
    )(*inputs)

    if with_stats:
        out, stats = res
        colsum = jnp.sum(stats[0::8, :Nc], axis=0)
        colsumsq = jnp.sum(stats[1::8, :Nc], axis=0)
        return out[:M, :Nc], colsum, colsumsq
    return res[0][:M, :Nc]


def _affine_kernel(x_ref, scale_ref, shift_ref, o_ref, *, relu):
    y = x_ref[...].astype(jnp.float32) * scale_ref[...] + shift_ref[...]
    if relu:
        y = jnp.maximum(y, 0.0)
    o_ref[...] = y.astype(o_ref.dtype)


def _affine_res_relu_kernel(x_ref, res_ref, scale_ref, shift_ref, o_ref):
    y = (x_ref[...].astype(jnp.float32) * scale_ref[...] + shift_ref[...]
         + res_ref[...].astype(jnp.float32))
    o_ref[...] = jnp.maximum(y, 0.0).astype(o_ref.dtype)


def affine_act(x2d, scale, shift, relu, residual=None, out_dtype=jnp.bfloat16):
    """y = x*scale + shift (+ residual) (+ ReLU), written back in bf16.

    2-D (rows, channels) parallel grid; large row tiles (pure HBM-BW pass)."""
    R, C = x2d.shape
    Cp = _round_up(C, 128)
    tc = _tile(Cp, 4)                       # <= 512 lanes per grid block
    tr = min(1024, _round_up(R, 16))        # 16-row multiples (bf16 packing)
    Rp = _round_up(R, tr)

    def pad_rows(a):
        if a.shape == (Rp, Cp):
            return a
        return jnp.pad(a, ((0, Rp - a.shape[0]), (0, Cp - a.shape[1])))

    def pad_vec(v):
        v = v.reshape(1, C).astype(jnp.float32)
        return v if C == Cp else jnp.pad(v, ((0, 0), (0, Cp - C)))

    x_p = pad_rows(x2d)
    sc, sh = pad_vec(scale), pad_vec(shift)

    grid = (Rp // tr, Cp // tc)
    row_spec = pl.BlockSpec((tr, tc), lambda i, j: (i, j))
    vec_spec = pl.BlockSpec((1, tc), lambda i, j: (0, j))
    cparams = pltpu.CompilerParams(dimension_semantics=("parallel", "parallel"))

    if residual is None:
        out = pl.pallas_call(
            functools.partial(_affine_kernel, relu=relu),
            out_shape=jax.ShapeDtypeStruct((Rp, Cp), out_dtype),
            grid_spec=pltpu.PrefetchScalarGridSpec(
                num_scalar_prefetch=0, grid=grid,
                in_specs=[row_spec, vec_spec, vec_spec],
                out_specs=row_spec),
            compiler_params=cparams,
        )(x_p, sc, sh)
    else:
        r_p = pad_rows(residual)
        out = pl.pallas_call(
            _affine_res_relu_kernel,
            out_shape=jax.ShapeDtypeStruct((Rp, Cp), out_dtype),
            grid_spec=pltpu.PrefetchScalarGridSpec(
                num_scalar_prefetch=0, grid=grid,
                in_specs=[row_spec, row_spec, vec_spec, vec_spec],
                out_specs=row_spec),
            compiler_params=cparams,
        )(x_p, r_p, sc, sh)
    return out[:R, :C]


def _avgpool_kernel(x_ref, o_ref, *, count):
    o_ref[...] = jnp.sum(x_ref[...].astype(jnp.float32), axis=1,
                         keepdims=True) * (1.0 / count)


def global_avg_pool(x_nhwc):
    """AdaptiveAvgPool2d(1): (N,H,W,C) -> (N,C) f32 (accumulated in f32)."""
    N, H, W, C = x_nhwc.shape
    HW = H * W
    HWp, Cp = _round_up(HW, 16), _round_up(C, 128)
    tc = _tile(Cp, 8)
    x3 = x_nhwc.reshape(N, HW, C)
    if (HW, C) != (HWp, Cp):
        x3 = jnp.pad(x3, ((0, 0), (0, HWp - HW), (0, Cp - C)))
    out = pl.pallas_call(
        functools.partial(_avgpool_kernel, count=HW),
        out_shape=jax.ShapeDtypeStruct((N, 1, Cp), jnp.float32),
        grid_spec=pltpu.PrefetchScalarGridSpec(
            num_scalar_prefetch=0,
            grid=(N, Cp // tc),
            in_specs=[pl.BlockSpec((1, HWp, tc), lambda n, c: (n, 0, c))],
            out_specs=pl.BlockSpec((1, 1, tc), lambda n, c: (n, 0, c)),
        ),
        compiler_params=pltpu.CompilerParams(
            dimension_semantics=("parallel", "parallel")),
    )(x3)
    return out[:, 0, :C]


# ----------------------------------------------------------------------------
# NN building blocks (glue around the Pallas kernels)
# ----------------------------------------------------------------------------
def conv2d(x_nhwc, w_hwio, bias=None, stride=1, padding=0, dilation=1,
           with_stats=False, out_dtype=jnp.bfloat16):
    """PyTorch-semantics Conv2d; x NHWC, weight HWIO (pre-transposed, bf16)."""
    N, H, W, Cin = x_nhwc.shape
    KH, KW, Cin2, Cout = w_hwio.shape
    assert Cin == Cin2
    Ho = (H + 2 * padding - dilation * (KH - 1) - 1) // stride + 1
    Wo = (W + 2 * padding - dilation * (KW - 1) - 1) // stride + 1
    xp = x_nhwc if padding == 0 else jnp.pad(
        x_nhwc, ((0, 0), (padding, padding), (padding, padding), (0, 0)))

    cols, wparts = [], []
    for ky in range(KH):
        for kx in range(KW):
            hs, ws = ky * dilation, kx * dilation
            he, we = hs + stride * (Ho - 1), ws + stride * (Wo - 1)
            # taps whose whole sampled window lies in the zero padding contribute 0
            if (he < padding or hs > padding + H - 1
                    or we < padding or ws > padding + W - 1):
                continue
            cols.append(xp[:, hs:he + 1:stride, ws:we + 1:stride, :])
            wparts.append(w_hwio[ky, kx])                 # (Cin, Cout)
    if not cols:  # degenerate: everything in padding -> zeros (+bias)
        cols.append(xp[:, 0:stride * (Ho - 1) + 1:stride,
                       0:stride * (Wo - 1) + 1:stride, :])
        wparts.append(w_hwio[0, 0])

    T = len(cols)
    patches = cols[0] if T == 1 else jnp.concatenate(cols, axis=-1)
    patches = patches.reshape(N * Ho * Wo, T * Cin)
    wmat = wparts[0] if T == 1 else jnp.concatenate(wparts, axis=0)

    res = pallas_matmul(patches, wmat, bias, with_stats=with_stats,
                        out_dtype=out_dtype)
    if with_stats:
        y, csum, csq = res
        return y.reshape(N, Ho, Wo, Cout), csum, csq
    return res.reshape(N, Ho, Wo, Cout)


def conv_bn(x, w, bn, relu=True, stride=1, padding=0, dilation=1,
            residual=None, eps=1e-5):
    """Conv -> train-mode BatchNorm (batch stats from the matmul epilogue)
    -> optional residual add -> optional ReLU, all Pallas."""
    assert residual is None or relu  # fused residual path always applies ReLU
    y, csum, csq = conv2d(x, w, None, stride, padding, dilation,
                          with_stats=True)
    N, H, W, C = y.shape
    m = N * H * W
    gamma, beta = bn
    mean = csum / m
    var = jnp.maximum(csq / m - mean * mean, 0.0)
    scale = gamma * jax.lax.rsqrt(var + eps)
    shift = beta - mean * scale
    res2d = None if residual is None else residual.reshape(m, C)
    out = affine_act(y.reshape(m, C), scale, shift, relu, residual=res2d)
    return out.reshape(N, H, W, C)


def max_pool_3x3_s2(x_nhwc):
    """3x3/2 max-pool as a maximum tree over 9 shifted strided views."""
    N, H, W, C = x_nhwc.shape
    Ho = (H + 2 - 3) // 2 + 1
    Wo = (W + 2 - 3) // 2 + 1
    xp = jnp.pad(x_nhwc, ((0, 0), (1, 1), (1, 1), (0, 0)),
                 constant_values=-jnp.inf)
    out = None
    for ky in range(3):
        for kx in range(3):
            v = xp[:, ky:ky + 2 * (Ho - 1) + 1:2,
                   kx:kx + 2 * (Wo - 1) + 1:2, :]
            out = v if out is None else jnp.maximum(out, v)
    return out


def _interp_matrix(out_size, in_size):
    """Bilinear (align_corners=False) 1-D interpolation matrix (out, in)."""
    if in_size == 1:
        return jnp.ones((out_size, 1), jnp.float32)
    scale = in_size / out_size
    i = jnp.arange(out_size, dtype=jnp.float32)
    src = jnp.maximum((i + 0.5) * scale - 0.5, 0.0)
    i0 = jnp.minimum(jnp.floor(src).astype(jnp.int32), in_size - 1)
    i1 = jnp.minimum(i0 + 1, in_size - 1)
    lam = src - i0.astype(jnp.float32)
    m = jnp.zeros((out_size, in_size), jnp.float32)
    m = m.at[jnp.arange(out_size), i0].add(1.0 - lam)
    m = m.at[jnp.arange(out_size), i1].add(lam)
    return m


def bilinear_resize_nchw(x, out_h, out_w):
    """Final 2-channel upsample; tiny, so a plain XLA contraction."""
    N, C, h, w = x.shape
    My = _interp_matrix(out_h, h)          # (out_h, h)
    Mx = _interp_matrix(out_w, w)          # (out_w, w)
    return jnp.einsum('Hh,nchw,Ww->ncHW', My, x.astype(jnp.float32), Mx)


# ----------------------------------------------------------------------------
# Parameter construction (deterministic, He-style init; BN gamma=1, beta=0)
# ----------------------------------------------------------------------------
class ParamGen:
    def __init__(self, seed=0):
        self.key = jax.random.PRNGKey(seed)

    def _next(self):
        self.key, sub = jax.random.split(self.key)
        return sub

    def conv(self, cout, cin, kh, kw):
        fan_in = cin * kh * kw
        w = jax.random.normal(self._next(), (cout, cin, kh, kw),
                              jnp.float32) * (2.0 / fan_in) ** 0.5
        # Pre-transpose to HWIO and pre-cast to bf16 once (matmul layout).
        return jnp.transpose(w, (2, 3, 1, 0)).astype(jnp.bfloat16)

    def bn(self, c):
        return jnp.ones((c,), jnp.float32), jnp.zeros((c,), jnp.float32)

    def bias(self, c):
        return jax.random.normal(self._next(), (c,), jnp.float32) * 0.01


def make_params():
    pg = ParamGen(0)
    params = {"conv1": pg.conv(64, 1, 7, 7), "bn1": pg.bn(64)}

    # ResNet50 backbone, replace_stride_with_dilation=[False, True, True]
    inplanes, dilation = 64, 1
    cfg = [("layer1", 64, 3, 1, False), ("layer2", 128, 4, 2, False),
           ("layer3", 256, 6, 2, True), ("layer4", 512, 3, 2, True)]
    for name, planes, blocks, stride, dilate in cfg:
        prev_dilation = dilation
        if dilate:
            dilation *= stride
            stride = 1
        layer = []
        for b in range(blocks):
            in_ch = inplanes if b == 0 else planes * 4
            s = stride if b == 0 else 1
            d = prev_dilation if b == 0 else dilation
            blk = {
                "conv1": pg.conv(planes, in_ch, 1, 1), "bn1": pg.bn(planes),
                "conv2": pg.conv(planes, planes, 3, 3), "bn2": pg.bn(planes),
                "conv3": pg.conv(planes * 4, planes, 1, 1), "bn3": pg.bn(planes * 4),
                "stride": s, "dilation": d,
            }
            if b == 0 and (s != 1 or in_ch != planes * 4):
                blk["down_conv"] = pg.conv(planes * 4, in_ch, 1, 1)
                blk["down_bn"] = pg.bn(planes * 4)
            layer.append(blk)
        inplanes = planes * 4
        params[name] = layer

    # DeepLabHead(2048, 2): ASPP(rates 12/24/36) -> 3x3 conv -> 1x1 classifier
    head = {
        "aspp0_conv": pg.conv(256, 2048, 1, 1), "aspp0_bn": pg.bn(256),
        "aspp_pool_conv": pg.conv(256, 2048, 1, 1), "aspp_pool_bn": pg.bn(256),
        "aspp_proj_conv": pg.conv(256, 5 * 256, 1, 1), "aspp_proj_bn": pg.bn(256),
        "head_conv": pg.conv(256, 256, 3, 3), "head_bn": pg.bn(256),
        "cls_conv": pg.conv(2, 256, 1, 1), "cls_bias": pg.bias(2),
    }
    for i, rate in enumerate([12, 24, 36], start=1):
        head[f"aspp{i}_conv"] = pg.conv(256, 2048, 3, 3)
        head[f"aspp{i}_bn"] = pg.bn(256)
        head[f"aspp{i}_rate"] = rate
    params["head"] = head
    return params


# ----------------------------------------------------------------------------
# Forward pass
# ----------------------------------------------------------------------------
def bottleneck(x, blk):
    identity = x
    out = conv_bn(x, blk["conv1"], blk["bn1"], relu=True)
    out = conv_bn(out, blk["conv2"], blk["bn2"], relu=True,
                  stride=blk["stride"], padding=blk["dilation"],
                  dilation=blk["dilation"])
    if "down_conv" in blk:
        identity = conv_bn(x, blk["down_conv"], blk["down_bn"], relu=False,
                           stride=blk["stride"])
    # conv3 + bn3 + residual add + ReLU fused into one matmul + one elementwise pass
    return conv_bn(out, blk["conv3"], blk["bn3"], relu=True, residual=identity)


def backbone(x, params):
    x = conv_bn(x, params["conv1"], params["bn1"], relu=True,
                stride=2, padding=3)
    x = max_pool_3x3_s2(x)
    for name in ("layer1", "layer2", "layer3", "layer4"):
        for blk in params[name]:
            x = bottleneck(x, blk)
    return x


def deeplab_head(x, head):
    N, H, W, C = x.shape
    branches = [conv_bn(x, head["aspp0_conv"], head["aspp0_bn"], relu=True)]
    for i in range(1, 4):
        rate = head[f"aspp{i}_rate"]
        branches.append(conv_bn(x, head[f"aspp{i}_conv"], head[f"aspp{i}_bn"],
                                relu=True, padding=rate, dilation=rate))
    pooled = global_avg_pool(x).reshape(N, 1, 1, C)
    p = conv_bn(pooled, head["aspp_pool_conv"], head["aspp_pool_bn"], relu=True)
    # bilinear upsample from 1x1 to HxW == broadcast
    branches.append(jnp.broadcast_to(p, (N, H, W, 256)))

    cat = jnp.concatenate(branches, axis=-1)          # (N, H, W, 1280) bf16
    y = conv_bn(cat, head["aspp_proj_conv"], head["aspp_proj_bn"], relu=True)
    # TODO(synk): Dropout(0.5) skipped (identity) — cannot reproduce torch RNG.
    y = conv_bn(y, head["head_conv"], head["head_bn"], relu=True, padding=1)
    y = conv2d(y, head["cls_conv"], bias=head["cls_bias"],
               out_dtype=jnp.float32)
    return y                                           # (N, H, W, 2) f32


def deeplabv3_forward(x_nchw, params):
    N, _, H, W = x_nchw.shape
    x = jnp.transpose(x_nchw, (0, 2, 3, 1)).astype(jnp.float32)   # NCHW -> NHWC
    feat = backbone(x, params)
    out = deeplab_head(feat, params["head"])
    out_nchw = jnp.transpose(out, (0, 3, 1, 2))                    # (N, 2, h, w)
    out_nchw = bilinear_resize_nchw(out_nchw, H, W)                # (N, 2, H, W)
    return {"out": out_nchw}


# ----------------------------------------------------------------------------
if __name__ == "__main__":
    key = jax.random.PRNGKey(0)
    x = jax.random.normal(key, (2, 1, 64, 64), jnp.float32)   # 1-channel input stem
    params = make_params()
    result = deeplabv3_forward(x, params)
    out = jax.block_until_ready(result["out"])
    assert out.shape == (2, 2, 64, 64), out.shape
    assert out.dtype == jnp.float32
    assert bool(jnp.all(jnp.isfinite(out)))
    print("KERNEL_OK")
</pallas_src>

<mosaic_0001>
module attributes {stable_mosaic.version = 11 : i64} {
  func.func @_matmul_kernel(%arg0: i32, %arg1: i32, %arg2: i32, %arg3: memref<256x128xbf16, #tpu.memory_space<vmem>>, %arg4: memref<128x128xbf16, #tpu.memory_space<vmem>>, %arg5: memref<256x128xbf16, #tpu.memory_space<vmem>>, %arg6: memref<8x128xf32, #tpu.memory_space<vmem>>) attributes {dimension_semantics = [#tpu.dimension_semantics<parallel>, #tpu.dimension_semantics<parallel>, #tpu.dimension_semantics<arbitrary>], iteration_bounds = array<i64: 8, 1, 1>, scalar_prefetch = 0 : i64, scratch_operands = 0 : i64, tpu.core_type = #tpu.core_type<tc>, window_params = [{transform_indices = @transform_0, window_bounds = array<i64: 256, 128>}, {transform_indices = @transform_1, window_bounds = array<i64: 128, 128>}, {transform_indices = @transform_2, window_bounds = array<i64: 256, 128>}, {transform_indices = @transform_3, window_bounds = array<i64: 8, 128>}]} {
    %c0 = arith.constant 0 : index
    %c0_0 = arith.constant 0 : index
    %0 = vector.load %arg3[%c0, %c0_0] : memref<256x128xbf16, #tpu.memory_space<vmem>>, vector<256x128xbf16>
    %c0_1 = arith.constant 0 : index
    %c0_2 = arith.constant 0 : index
    %1 = vector.load %arg4[%c0_1, %c0_2] : memref<128x128xbf16, #tpu.memory_space<vmem>>, vector<128x128xbf16>
    %cst = arith.constant dense<0.000000e+00> : vector<256x128xf32>
    %2 = tpu.matmul %0, %1, %cst {dimension_numbers = #tpu.dot_dimension_numbers<[1], [0], [0], [1], [0, 0, 1, 1], [], []>} : vector<256x128xbf16>, vector<128x128xbf16>, vector<256x128xf32> -> vector<256x128xf32>
    %3 = arith.truncf %2 : vector<256x128xf32> to vector<256x128xbf16>
    %c0_3 = arith.constant 0 : index
    %c0_4 = arith.constant 0 : index
    %4 = vector.load %arg5[%c0_3, %c0_4] : memref<256x128xbf16, #tpu.memory_space<vmem>>, vector<256x128xbf16>
    tpu.vector_store %arg5[%c0_3, %c0_4], %3 {strides = array<i32>} : memref<256x128xbf16, #tpu.memory_space<vmem>>, vector<256x128xbf16>,
    %cst_5 = arith.constant dense<0.000000e+00> : vector<128xf32>
    %5 = vector.multi_reduction <add>, %2, %cst_5 [0] : vector<256x128xf32> to vector<128xf32>
    %6 = vector.shape_cast %5 : vector<128xf32> to vector<1x128xf32>
    %7 = arith.mulf %2, %2 : vector<256x128xf32>
    %cst_6 = arith.constant dense<0.000000e+00> : vector<128xf32>
    %8 = vector.multi_reduction <add>, %7, %cst_6 [0] : vector<256x128xf32> to vector<128xf32>
    %9 = vector.shape_cast %8 : vector<128xf32> to vector<1x128xf32>
    %10 = tpu.iota {dimensions = array<i32: 0>} : vector<8x128xi32>
    %c0_i32 = arith.constant 0 : i32
    %11 = vector.broadcast %c0_i32 : i32 to vector<8x128xi32>
    %12 = arith.cmpi eq, %10, %11 : vector<8x128xi32>
    %cst_7 = arith.constant 0.000000e+00 : f32
    %13 = vector.shape_cast %6 : vector<1x128xf32> to vector<1x128xf32>
    %14 = vector.broadcast %13 : vector<1x128xf32> to vector<8x128xf32>
    %15 = vector.broadcast %cst_7 : f32 to vector<8x128xf32>
    %16 = arith.select %12, %14, %15 : vector<8x128xi1>, vector<8x128xf32>
    %c1_i32 = arith.constant 1 : i32
    %17 = vector.broadcast %c1_i32 : i32 to vector<8x128xi32>
    %18 = arith.cmpi eq, %10, %17 : vector<8x128xi32>
    %cst_8 = arith.constant 0.000000e+00 : f32
    %19 = vector.shape_cast %9 : vector<1x128xf32> to vector<1x128xf32>
    %20 = vector.broadcast %19 : vector<1x128xf32> to vector<8x128xf32>
    %21 = vector.broadcast %cst_8 : f32 to vector<8x128xf32>
    %22 = arith.select %18, %20, %21 : vector<8x128xi1>, vector<8x128xf32>
    %23 = arith.addf %16, %22 : vector<8x128xf32>
    %c0_9 = arith.constant 0 : index
    %c0_10 = arith.constant 0 : index
    %24 = vector.load %arg6[%c0_9, %c0_10] : memref<8x128xf32, #tpu.memory_space<vmem>>, vector<8x128xf32>
    tpu.vector_store %arg6[%c0_9, %c0_10], %23 {strides = array<i32>} : memref<8x128xf32, #tpu.memory_space<vmem>>, vector<8x128xf32>,
    return
  }
  func.func @transform_0(%arg0: i32, %arg1: i32, %arg2: i32) -> (i32, i32) {
    %c0_i32 = arith.constant 0 : i32
    return %arg0, %arg2 : i32, i32
  }
  func.func @transform_1(%arg0: i32, %arg1: i32, %arg2: i32) -> (i32, i32) {
    %c0_i32 = arith.constant 0 : i32
    return %arg2, %arg1 : i32, i32
  }
  func.func @transform_2(%arg0: i32, %arg1: i32, %arg2: i32) -> (i32, i32) {
    %c0_i32 = arith.constant 0 : i32
    return %arg0, %arg1 : i32, i32
  }
  func.func @transform_3(%arg0: i32, %arg1: i32, %arg2: i32) -> (i32, i32) {
    %c0_i32 = arith.constant 0 : i32
    return %arg0, %arg1 : i32, i32
  }
}

</mosaic_0001>

<llo_original>
// kernel: tpu_custom_call.1
$region0: #{tpu_custom_call.1}
  #allocation0 [shape = 'u32[]', space=smem, size = 0x4, offset = 0x4, fixed_abs, tag = 'smem constant byte address 0x4 - core index']
  #allocation1 [shape = 'u32[144,128]{1,0:T(1,128)}', space=vmem, size = 0x12000, scoped, tag = 'internal scratch']
  %s0 = inlined_call_operand.hbm [shape: bf16[2048,128], index: 0, kind: input, shape index: {}]
  %s1 = inlined_call_operand.hbm [shape: bf16[128,128], index: 1, kind: input, shape index: {}]
  %s2 = inlined_call_operand.hbm [shape: bf16[2048,128], index: 2, kind: output, shape index: {0}]
  %s3 = inlined_call_operand.hbm [shape: f32[64,128], index: 3, kind: output, shape index: {1}]
  %4 = xla_tuple %s2, %s3
  %s5 = sld [smem:[#allocation0]]
  $region57: #{tpu_custom_call.1} parent=0
    _
  %s7 = ssub.s32 1, %s5
  %s8 = scalar_select 0, %s7, %s5
  $region1: #{tpu_custom_call.1} parent=0
    #allocation2 [shape = 'u8[131072]{0}', space=vmem, size = 0x20000, scoped, tag = 'input window, operand 0']
    #allocation3 [shape = 's32[2]{0}', space=sflag, size = 0x8, scoped, tag = 'scoped memory for tpu_custom_call.1']
    #allocation4 [shape = 's32[2]{0}', space=sflag, size = 0x8, scoped, tag = 'scoped memory for tpu_custom_call.1']
    #allocation5 [shape = 'u8[32768]{0}', space=vmem, size = 0x8000, scoped, tag = 'input window, operand 1, single buffered']
    #allocation6 [shape = 's32[1]{0}', space=sflag, size = 0x4, scoped, tag = 'scoped memory for tpu_custom_call.1']
    #allocation7 [shape = 'u8[131072]{0}', space=vmem, size = 0x20000, scoped, tag = 'output window, operand 0']
    #allocation8 [shape = 'u8[8192]{0}', space=vmem, size = 0x2000, scoped, tag = 'output window, operand 1']
    #allocation9 [shape = 's32[2]{0}', space=sflag, size = 0x8, scoped, tag = 'scoped memory for tpu_custom_call.1']
    %9 = vsyncpa [#allocation3], 0
    %s10 = scalar_lea.sflag [#allocation3], 1
    %11 = vsyncpa %s10, 0
    %12 = vsyncpa [#allocation6], 0
    %13 = vsyncpa [#allocation4], 0
    %s14 = scalar_lea.sflag [#allocation4], 1
    %15 = vsyncpa %s14, 0
    %16 = vsyncpa [#allocation9], 0
    %s17 = scalar_lea.sflag [#allocation9], 1
    %18 = vsyncpa %s17, 0
    loop: start=0, step=1, limit=10
    $region2: #{tpu_custom_call.1} parent=1 // loop_pre_header
      _
    $region3: #{tpu_custom_call.1} parent=1 // loop_header
      %s20 = sphi 0, %s24
      %p21 = scmp.ge.s32.totalorder %s20, 10
      %s27 = sphi 0, %s46
      %s28 = sphi 0, %s42
      %s29 = sphi 0, %s38
      %s30 = sphi 0, %s27
      %s31 = sphi 0, %s28
      %s32 = sphi 0, %s29
      %s33 = sphi 0, %s30
      %s34 = sphi 0, %s31
      %s35 = sphi 0, %s32
      %s51 = sphi 0, %s53
      %s54 = sphi 0, %s51
      %s55 = sphi 0, %s54
      %s71 = sphi 0, %s55
      %s79 = sphi 0, %s81
      %s82 = sphi 0, %s79
      %s83 = sphi 0, %s82
      %s99 = sphi 0, %s83
      %s107 = sphi 0, %s109
      %s110 = sphi 0, %s107
      %s111 = sphi 0, %s110
      %s127 = sphi 0, %s111
      %s135 = sphi 0, %s137
      %s138 = sphi 0, %s135
      %s139 = sphi 0, %s138
      %s155 = sphi 0, %s139
    $region4: #{tpu_custom_call.1} parent=1 // loop_header_branch
      %23 = sbr.rel (%p21) target = $region8
    $region5: #{tpu_custom_call.1} parent=1 // loop_body
      %s25 = ssub.s32 %s20, 1
      %s26 = ssub.s32 %s20, 2
      %s36 = sadd.s32 1, %s29
      %p37 = scmp.ge.s32.totalorder %s36, 1
      %s38 = scalar_select %p37, 0, %s36
      %s39 = sadd.s32 1, %s28
      %s40 = scalar_select %p37, %s39, %s28
      %p41 = scmp.ge.s32.totalorder %s40, 1
      %s42 = scalar_select %p41, 0, %s40
      %s43 = sadd.s32 1, %s27
      %s44 = scalar_select %p41, %s43, %s27
      %p45 = scmp.ge.s32.totalorder %s44, 8
      %s46 = scalar_select %p45, 0, %s44
      %s47 = ssub.s32 %s27, %s46
      %s48 = ssub.s32 %s29, %s38
      %s49 = sor.u32 %s47, %s48
      %p50 = scmp.eq.s32.totalorder %s49, 0
      %s52 = sadd.s32 %s51, 1
      %s53 = scalar_select %p50, %s51, %s52
      %p56 = pneg %p50
      %p57 = scmp.eq.s32.totalorder %s20, 7
      %p58 = por %p56, %p57
      %p59 = scmp.ne.s32.totalorder %s51, %s54
      %p60 = scmp.eq.s32.totalorder %s20, 0
      %p61 = por %p59, %p60
      %p62 = scmp.ne.s32.totalorder %s51, %s54
      %p63 = scmp.eq.s32.totalorder %s25, 7
      %p64 = por %p62, %p63
      %p65 = scmp.ne.s32.totalorder %s54, %s55
      %p66 = scmp.eq.s32.totalorder %s25, 0
      %p67 = por %p65, %p66
      %p68 = scmp.ne.s32.totalorder %s54, %s55
      %p69 = scmp.eq.s32.totalorder %s26, 7
      %p70 = por %p68, %p69
      %p72 = scmp.ne.s32.totalorder %s55, %s71
      %p73 = scmp.eq.s32.totalorder %s26, 0
      %p74 = por %p72, %p73
      %s75 = ssub.s32 %s29, %s38
      %s76 = ssub.s32 %s28, %s42
      %s77 = sor.u32 %s75, %s76
      %p78 = scmp.eq.s32.totalorder %s77, 0
      %s80 = sadd.s32 %s79, 1
      %s81 = scalar_select %p78, %s79, %s80
      %p84 = pneg %p78
      %p85 = scmp.eq.s32.totalorder %s20, 7
      %p86 = por %p84, %p85
      %p87 = scmp.ne.s32.totalorder %s79, %s82
      %p88 = scmp.eq.s32.totalorder %s20, 0
      %p89 = por %p87, %p88
      %p90 = scmp.ne.s32.totalorder %s79, %s82
      %p91 = scmp.eq.s32.totalorder %s25, 7
      %p92 = por %p90, %p91
      %p93 = scmp.ne.s32.totalorder %s82, %s83
      %p94 = scmp.eq.s32.totalorder %s25, 0
      %p95 = por %p93, %p94
      %p96 = scmp.ne.s32.totalorder %s82, %s83
      %p97 = scmp.eq.s32.totalorder %s26, 7
      %p98 = por %p96, %p97
      %p100 = scmp.ne.s32.totalorder %s83, %s99
      %p101 = scmp.eq.s32.totalorder %s26, 0
      %p102 = por %p100, %p101
      %s103 = ssub.s32 %s27, %s46
      %s104 = ssub.s32 %s28, %s42
      %s105 = sor.u32 %s103, %s104
      %p106 = scmp.eq.s32.totalorder %s105, 0
      %s108 = sadd.s32 %s107, 1
      %s109 = scalar_select %p106, %s107, %s108
      %p112 = pneg %p106
      %p113 = scmp.eq.s32.totalorder %s20, 7
      %p114 = por %p112, %p113
      %p115 = scmp.ne.s32.totalorder %s107, %s110
      %p116 = scmp.eq.s32.totalorder %s20, 0
      %p117 = por %p115, %p116
      %p118 = scmp.ne.s32.totalorder %s107, %s110
      %p119 = scmp.eq.s32.totalorder %s25, 7
      %p120 = por %p118, %p119
      %p121 = scmp.ne.s32.totalorder %s110, %s111
      %p122 = scmp.eq.s32.totalorder %s25, 0
      %p123 = por %p121, %p122
      %p124 = scmp.ne.s32.totalorder %s110, %s111
      %p125 = scmp.eq.s32.totalorder %s26, 7
      %p126 = por %p124, %p125
      %p128 = scmp.ne.s32.totalorder %s111, %s127
      %p129 = scmp.eq.s32.totalorder %s26, 0
      %p130 = por %p128, %p129
      %s131 = ssub.s32 %s27, %s46
      %s132 = ssub.s32 %s28, %s42
      %s133 = sor.u32 %s131, %s132
      %p134 = scmp.eq.s32.totalorder %s133, 0
      %s136 = sadd.s32 %s135, 1
      %s137 = scalar_select %p134, %s135, %s136
      %p140 = pneg %p134
      %p141 = scmp.eq.s32.totalorder %s20, 7
      %p142 = por %p140, %p141
      %p143 = scmp.ne.s32.totalorder %s135, %s138
      %p144 = scmp.eq.s32.totalorder %s20, 0
      %p145 = por %p143, %p144
      %p146 = scmp.ne.s32.totalorder %s135, %s138
      %p147 = scmp.eq.s32.totalorder %s25, 7
      %p148 = por %p146, %p147
      %p149 = scmp.ne.s32.totalorder %s138, %s139
      %p150 = scmp.eq.s32.totalorder %s25, 0
      %p151 = por %p149, %p150
      %p152 = scmp.ne.s32.totalorder %s138, %s139
      %p153 = scmp.eq.s32.totalorder %s26, 7
      %p154 = por %p152, %p153
      %p156 = scmp.ne.s32.totalorder %s139, %s155
      %p157 = scmp.eq.s32.totalorder %s26, 0
      %p158 = por %p156, %p157
      %p159 = scmp.le.s32.totalorder 1, %s20
      %p160 = scmp.lt.s32.totalorder %s20, 9
      %p161 = pnand %p159, %p160
      %p162 = pneg %p161
      // Predicated region
      $region9: #{tpu_custom_call.1} parent=5 // pred_check
        _
      $region10: #{tpu_custom_call.1} parent=5 // pred_check_branch
        %164 = sbr.rel (%p161) target = $region12
      $region11: #{tpu_custom_call.1} parent=5 // pred_region
        %s165 = ssub.s32 %s20, 1
        // Predicated region
        $region13: #{tpu_custom_call.1} parent=11 // pred_check
          %p166 = pneg %p95
        $region14: #{tpu_custom_call.1} parent=11 // pred_check_branch
          %168 = sbr.rel (%p166) target = $region16
        $region15: #{tpu_custom_call.1} parent=11 // pred_region
          %s169 = smul.u32 16, %s32
          %s171 = ssub.s32 1024, 1024
          %172 = vsyncadd [#allocation6], %s171
          %s173 = sadd.s32 %s31, %s169
          %s174 = smul.addr %s173, 64
          %s175 = scalar_lea.hbm %s1, %s174
          %s176 = sshll.u32 [#allocation5], 4
          %s177 = int_to_ptr.vmem [resolvable:$true] %s176
          %182 = dma.hbm_to_vmem [thread:$0]  %s175, 1024, %s177, [#allocation6], 64, 64, 4
        $region16: #{tpu_custom_call.1} parent=11 // pred_fallthru
          _
      $region12: #{tpu_custom_call.1} parent=5 // pred_fallthru
        _
      %p183 = scmp.lt.s32.totalorder %s20, 8
      // Predicated region
      $region17: #{tpu_custom_call.1} parent=5 // pred_check
        %p184 = pneg %p183
      $region18: #{tpu_custom_call.1} parent=5 // pred_check_branch
        %186 = sbr.rel (%p184) target = $region20
      $region19: #{tpu_custom_call.1} parent=5 // pred_region
        // Predicated region
        $region21: #{tpu_custom_call.1} parent=19 // pred_check
          %p187 = pneg %p61
        $region22: #{tpu_custom_call.1} parent=19 // pred_check_branch
          %189 = sbr.rel (%p187) target = $region24
        $region23: #{tpu_custom_call.1} parent=19 // pred_region
          %s190 = sand.u32 %s51, 1
          %s191 = scalar_lea.sflag [#allocation3], %s190
          %s192 = sand.u32 %s51, 1
          %s193 = smul.addr %s192, 128
          %s194 = scalar_lea.vmem [#allocation2], %s193
          %s195 = smul.u32 32, %s27
          %s197 = ssub.s32 2048, 2048
          %198 = vsyncadd %s191, %s197
          %s199 = sadd.s32 %s29, %s195
          %s200 = smul.addr %s199, 64
          %s201 = scalar_lea.hbm %s0, %s200
          %s202 = sshll.u32 %s194, 4
          %s203 = int_to_ptr.vmem [resolvable:$true] %s202
          %208 = dma.hbm_to_vmem [thread:$0]  %s201, 2048, %s203, %s191, 64, 64, 4
        $region24: #{tpu_custom_call.1} parent=19 // pred_fallthru
          _
      $region20: #{tpu_custom_call.1} parent=5 // pred_fallthru
        _
      %p209 = scmp.le.s32.totalorder 1, %s20
      %p210 = scmp.lt.s32.totalorder %s20, 9
      %p211 = pnand %p209, %p210
      %p212 = pneg %p211
      // Predicated region
      $region25: #{tpu_custom_call.1} parent=5 // pred_check
        _
      $region26: #{tpu_custom_call.1} parent=5 // pred_check_branch
        %214 = sbr.rel (%p211) target = $region28
      $region27: #{tpu_custom_call.1} parent=5 // pred_region
        %s215 = ssub.s32 %s20, 1
        %s216 = sand.u32 %s54, 1
        %s217 = scalar_lea.sflag [#allocation3], %s216
        %s218 = sand.u32 %s54, 1
        %s219 = smul.addr %s218, 128
        %s220 = scalar_lea.vmem [#allocation2], %s219
        // Predicated region
        $region29: #{tpu_custom_call.1} parent=27 // pred_check
          %p221 = pneg %p67
        $region30: #{tpu_custom_call.1} parent=27 // pred_check_branch
          %223 = sbr.rel (%p221) target = $region32
        $region31: #{tpu_custom_call.1} parent=27 // pred_region
          %224 = dma.done %s217, 2048
        $region32: #{tpu_custom_call.1} parent=27 // pred_fallthru
          _
        // Predicated region
        $region33: #{tpu_custom_call.1} parent=27 // pred_check
          %p225 = pneg %p95
        $region34: #{tpu_custom_call.1} parent=27 // pred_check_branch
          %227 = sbr.rel (%p225) target = $region36
        $region35: #{tpu_custom_call.1} parent=27 // pred_region
          %228 = dma.done [#allocation6], 1024
        $region36: #{tpu_custom_call.1} parent=27 // pred_fallthru
          _
        %s229 = sand.u32 %s54, 1
        %s230 = scalar_lea.sflag [#allocation3], %s229
        %s231 = sand.u32 %s54, 1
        %s232 = smul.addr %s231, 128
        %s233 = scalar_lea.vmem [#allocation2], %s232
        %p234 = pneg %p67
        %p235 = pneg %p64
        %p236 = pneg %p95
        %p237 = pneg %p92
        %p238 = pneg %p123
        %p239 = pneg %p120
        %s240 = sand.u32 %s110, 1
        %s241 = scalar_lea.sflag [#allocation4], %s240
        %s242 = sand.u32 %s110, 1
        %s243 = smul.addr %s242, 128
        %s244 = scalar_lea.vmem [#allocation7], %s243
        %p245 = pneg %p151
        %p246 = pneg %p148
        %s247 = sand.u32 %s138, 1
        %s248 = scalar_lea.sflag [#allocation9], %s247
        %s249 = sand.u32 %s138, 1
        %s250 = smul.addr %s249, 8
        %s251 = scalar_lea.vmem [#allocation8], %s250
        %s252 = smul.u32 32, %s30
        %s253 = smul.u32 16, %s32
        %s254 = smul.u32 32, %s30
        %v256 = vld [vmem:[%s220] sm:$0xf]
        %v257 = vld [vmem:[%s220 + $0x4] sm:$0xf]
        %v258 = vld [vmem:[%s220 + $0x8] sm:$0xf]
        %v259 = vld [vmem:[%s220 + $0xc] sm:$0xf]
        %v260 = vld [vmem:[%s220 + $0x10] sm:$0xf]
        %v261 = vld [vmem:[%s220 + $0x14] sm:$0xf]
        %v262 = vld [vmem:[%s220 + $0x18] sm:$0xf]
        %v263 = vld [vmem:[%s220 + $0x1c] sm:$0xf]
        %v264 = vld [vmem:[%s220 + $0x20] sm:$0xf]
        %v265 = vld [vmem:[%s220 + $0x24] sm:$0xf]
        %v266 = vld [vmem:[%s220 + $0x28] sm:$0xf]
        %v267 = vld [vmem:[%s220 + $0x2c] sm:$0xf]
        %v268 = vld [vmem:[%s220 + $0x30] sm:$0xf]
        %v269 = vld [vmem:[%s220 + $0x34] sm:$0xf]
        %v270 = vld [vmem:[%s220 + $0x38] sm:$0xf]
        %v271 = vld [vmem:[%s220 + $0x3c] sm:$0xf]
        %v272 = vld [vmem:[%s220 + $0x40] sm:$0xf]
        %v273 = vld [vmem:[%s220 + $0x44] sm:$0xf]
        %v274 = vld [vmem:[%s220 + $0x48] sm:$0xf]
        %v275 = vld [vmem:[%s220 + $0x4c] sm:$0xf]
        %v276 = vld [vmem:[%s220 + $0x50] sm:$0xf]
        %v277 = vld [vmem:[%s220 + $0x54] sm:$0xf]
        %v278 = vld [vmem:[%s220 + $0x58] sm:$0xf]
        %v279 = vld [vmem:[%s220 + $0x5c] sm:$0xf]
        %v280 = vld [vmem:[%s220 + $0x60] sm:$0xf]
        %v281 = vld [vmem:[%s220 + $0x64] sm:$0xf]
        %v282 = vld [vmem:[%s220 + $0x68] sm:$0xf]
        %v283 = vld [vmem:[%s220 + $0x6c] sm:$0xf]
        %v284 = vld [vmem:[%s220 + $0x70] sm:$0xf]
        %v285 = vld [vmem:[%s220 + $0x74] sm:$0xf]
        %v286 = vld [vmem:[%s220 + $0x78] sm:$0xf]
        %v287 = vld [vmem:[%s220 + $0x7c] sm:$0xf]
        %v288 = vld [vmem:[#allocation5] sm:$0xf]
        %v289 = vld [vmem:[#allocation5 + $0x4] sm:$0xf]
        %v290 = vld [vmem:[#allocation5 + $0x8] sm:$0xf]
        %v291 = vld [vmem:[#allocation5 + $0xc] sm:$0xf]
        %v292 = vld [vmem:[#allocation5 + $0x10] sm:$0xf]
        %v293 = vld [vmem:[#allocation5 + $0x14] sm:$0xf]
        %v294 = vld [vmem:[#allocation5 + $0x18] sm:$0xf]
        %v295 = vld [vmem:[#allocation5 + $0x1c] sm:$0xf]
        %v296 = vld [vmem:[#allocation5 + $0x20] sm:$0xf]
        %v297 = vld [vmem:[#allocation5 + $0x24] sm:$0xf]
        %v298 = vld [vmem:[#allocation5 + $0x28] sm:$0xf]
        %v299 = vld [vmem:[#allocation5 + $0x2c] sm:$0xf]
        %v300 = vld [vmem:[#allocation5 + $0x30] sm:$0xf]
        %v301 = vld [vmem:[#allocation5 + $0x34] sm:$0xf]
        %v302 = vld [vmem:[#allocation5 + $0x38] sm:$0xf]
        %v303 = vld [vmem:[#allocation5 + $0x3c] sm:$0xf]
        %v336 = vunpack.c.l.b16 %v256
        %v337 = vunpack.c.l.b16 %v257
        %v338 = vunpack.c.l.b16 %v258
        %v339 = vunpack.c.l.b16 %v259
        %v340 = vunpack.c.l.b16 %v260
        %v341 = vunpack.c.l.b16 %v261
        %v342 = vunpack.c.l.b16 %v262
        %v343 = vunpack.c.l.b16 %v263
        %v344 = vunpack.c.l.b16 %v264
        %v345 = vunpack.c.l.b16 %v265
        %v346 = vunpack.c.l.b16 %v266
        %v347 = vunpack.c.l.b16 %v267
        %v348 = vunpack.c.l.b16 %v268
        %v349 = vunpack.c.l.b16 %v269
        %v350 = vunpack.c.l.b16 %v270
        %v351 = vunpack.c.l.b16 %v271
        %v352 = vunpack.c.l.b16 %v272
        %v353 = vunpack.c.l.b16 %v273
        %v354 = vunpack.c.l.b16 %v274
        %v355 = vunpack.c.l.b16 %v275
        %v356 = vunpack.c.l.b16 %v276
        %v357 = vunpack.c.l.b16 %v277
        %v358 = vunpack.c.l.b16 %v278
        %v359 = vunpack.c.l.b16 %v279
        %v360 = vunpack.c.l.b16 %v280
        %v361 = vunpack.c.l.b16 %v281
        %v362 = vunpack.c.l.b16 %v282
        %v363 = vunpack.c.l.b16 %v283
        %v364 = vunpack.c.l.b16 %v284
        %v365 = vunpack.c.l.b16 %v285
        %v366 = vunpack.c.l.b16 %v286
        %v367 = vunpack.c.l.b16 %v287
        %v368 = vpack.c.b16 %v337, %v336
        %v369 = vpack.c.b16 %v339, %v338
        %v370 = vpack.c.b16 %v341, %v340
        %v371 = vpack.c.b16 %v343, %v342
        %v372 = vpack.c.b16 %v345, %v344
        %v373 = vpack.c.b16 %v347, %v346
        %v374 = vpack.c.b16 %v349, %v348
        %v375 = vpack.c.b16 %v351, %v350
        %v376 = vpack.c.b16 %v353, %v352
        %v377 = vpack.c.b16 %v355, %v354
        %v378 = vpack.c.b16 %v357, %v356
        %v379 = vpack.c.b16 %v359, %v358
        %v380 = vpack.c.b16 %v361, %v360
        %v381 = vpack.c.b16 %v363, %v362
        %v382 = vpack.c.b16 %v365, %v364
        %v383 = vpack.c.b16 %v367, %v366
        %v416 = vunpack.c.l.b16 %v288
        %v417 = vunpack.c.l.b16 %v289
        %v418 = vunpack.c.l.b16 %v290
        %v419 = vunpack.c.l.b16 %v291
        %v420 = vunpack.c.l.b16 %v292
        %v421 = vunpack.c.l.b16 %v293
        %v422 = vunpack.c.l.b16 %v294
        %v423 = vunpack.c.l.b16 %v295
        %v424 = vunpack.c.l.b16 %v296
        %v425 = vunpack.c.l.b16 %v297
        %v426 = vunpack.c.l.b16 %v298
        %v427 = vunpack.c.l.b16 %v299
        %v428 = vunpack.c.l.b16 %v300
        %v429 = vunpack.c.l.b16 %v301
        %v430 = vunpack.c.l.b16 %v302
        %v431 = vunpack.c.l.b16 %v303
        %v432 = vpack.c.b16 %v417, %v416
        %v433 = vpack.c.b16 %v419, %v418
        %v434 = vpack.c.b16 %v421, %v420
        %v435 = vpack.c.b16 %v423, %v422
        %v436 = vpack.c.b16 %v425, %v424
        %v437 = vpack.c.b16 %v427, %v426
        %v438 = vpack.c.b16 %v429, %v428
        %v439 = vpack.c.b16 %v431, %v430
        %448 = vmatprep.subr.bf16.mxu0 0
        %449 = vmatpush1.bf16.msra.mxu0 %v432
        %450 = vmatprep.subr.bf16.mxu0 0
        %451 = vmatpush1.bf16.msra.mxu0 %v433
        %452 = vmatprep.subr.bf16.mxu0 0
        %453 = vmatpush1.bf16.msra.mxu0 %v434
        %454 = vmatprep.subr.bf16.mxu0 0
        %455 = vmatpush1.bf16.msra.mxu0 %v435
        %456 = vmatprep.subr.bf16.mxu0 0
        %457 = vmatpush1.bf16.msra.mxu0 %v436
        %458 = vmatprep.subr.bf16.mxu0 0
        %459 = vmatpush1.bf16.msra.mxu0 %v437
        %460 = vmatprep.subr.bf16.mxu0 0
        %461 = vmatpush1.bf16.msra.mxu0 %v438
        %462 = vmatprep.subr.bf16.mxu0 0
        %463 = vmatpush1.bf16.msra.mxu0 %v439
        %464 = vmatprep.subr.bf16.mxu0 0
        %465 = vmatpush1.bf16.msra.mxu0 0
        %466 = vmatprep.subr.bf16.mxu0 0
        %467 = vmatpush1.bf16.msra.mxu0 0
        %468 = vmatprep.subr.bf16.mxu0 0
        %469 = vmatpush1.bf16.msra.mxu0 0
        %470 = vmatprep.subr.bf16.mxu0 0
        %471 = vmatpush1.bf16.msra.mxu0 0
        %472 = vmatprep.subr.bf16.mxu0 0
        %473 = vmatpush1.bf16.msra.mxu0 0
        %474 = vmatprep.subr.bf16.mxu0 0
        %475 = vmatpush1.bf16.msra.mxu0 0
        %476 = vmatprep.subr.bf16.mxu0 0
        %477 = vmatpush1.bf16.msra.mxu0 0
        %478 = vmatprep.subr.bf16.mxu0 0
        %479 = vmatpush1.bf16.msra.mxu0 0
        %480 = vmatprep.mubr.bf16.mxu0 0
        %481 = vmatmul.mubr.bf16.gmra.mrb[0].mxu0 %v368
        %v482 = vpop.f32.mrb[0].mxu0
        %v483 = vadd.f32 0.0, %v482
        %v484 = vpop.f32.mrb[0].mxu0
        %v485 = vpop.f32.mrb[0].mxu0
        %v486 = vadd.f32 0.0, %v485
        %v487 = vpop.f32.mrb[0].mxu0
        %488 = vmatprep.mubr.bf16.mxu0 0
        %489 = vmatmul.mubr.bf16.gmra.mrb[0].mxu0 %v369
        %v490 = vpop.f32.mrb[0].mxu0
        %v491 = vadd.f32 0.0, %v490
        %v492 = vpop.f32.mrb[0].mxu0
        %v493 = vpop.f32.mrb[0].mxu0
        %v494 = vadd.f32 0.0, %v493
        %v495 = vpop.f32.mrb[0].mxu0
        %496 = vmatprep.mubr.bf16.mxu0 0
        %497 = vmatmul.mubr.bf16.gmra.mrb[0].mxu0 %v370
        %v498 = vpop.f32.mrb[0].mxu0
        %v499 = vadd.f32 0.0, %v498
        %v500 = vpop.f32.mrb[0].mxu0
        %v501 = vpop.f32.mrb[0].mxu0
        %v502 = vadd.f32 0.0, %v501
        %v503 = vpop.f32.mrb[0].mxu0
        %504 = vmatprep.mubr.bf16.mxu0 0
        %505 = vmatmul.mubr.bf16.gmra.mrb[0].mxu0 %v371
        %v506 = vpop.f32.mrb[0].mxu0
        %v507 = vadd.f32 0.0, %v506
        %v508 = vpop.f32.mrb[0].mxu0
        %v509 = vpop.f32.mrb[0].mxu0
        %v510 = vadd.f32 0.0, %v509
        %v511 = vpop.f32.mrb[0].mxu0
        %512 = vmatprep.mubr.bf16.mxu0 0
        %513 = vmatmul.mubr.bf16.gmra.mrb[0].mxu0 %v372
        %v514 = vpop.f32.mrb[0].mxu0
        %v515 = vadd.f32 0.0, %v514
        %v516 = vpop.f32.mrb[0].mxu0
        %v517 = vpop.f32.mrb[0].mxu0
        %v518 = vadd.f32 0.0, %v517
        %v519 = vpop.f32.mrb[0].mxu0
        %520 = vmatprep.mubr.bf16.mxu0 0
        %521 = vmatmul.mubr.bf16.gmra.mrb[0].mxu0 %v373
        %v522 = vpop.f32.mrb[0].mxu0
        %v523 = vadd.f32 0.0, %v522
        %v524 = vpop.f32.mrb[0].mxu0
        %v525 = vpop.f32.mrb[0].mxu0
        %v526 = vadd.f32 0.0, %v525
        %v527 = vpop.f32.mrb[0].mxu0
        %528 = vmatprep.mubr.bf16.mxu0 0
        %529 = vmatmul.mubr.bf16.gmra.mrb[0].mxu0 %v374
        %v530 = vpop.f32.mrb[0].mxu0
        %v531 = vadd.f32 0.0, %v530
        %v532 = vpop.f32.mrb[0].mxu0
        %v533 = vpop.f32.mrb[0].mxu0
        %v534 = vadd.f32 0.0, %v533
        %v535 = vpop.f32.mrb[0].mxu0
        %536 = vmatprep.mubr.bf16.mxu0 0
        %537 = vmatmul.mubr.bf16.gmra.mrb[0].mxu0 %v375
        %v538 = vpop.f32.mrb[0].mxu0
        %v539 = vadd.f32 0.0, %v538
        %v540 = vpop.f32.mrb[0].mxu0
        %v541 = vpop.f32.mrb[0].mxu0
        %v542 = vadd.f32 0.0, %v541
        %v543 = vpop.f32.mrb[0].mxu0
        %544 = vmatprep.mubr.bf16.mxu0 0
        %545 = vmatmul.mubr.bf16.gmra.mrb[0].mxu0 %v376
        %v546 = vpop.f32.mrb[0].mxu0
        %v547 = vadd.f32 0.0, %v546
        %v548 = vpop.f32.mrb[0].mxu0
        %v549 = vpop.f32.mrb[0].mxu0
        %v550 = vadd.f32 0.0, %v549
        %v551 = vpop.f32.mrb[0].mxu0
        %552 = vmatprep.mubr.bf16.mxu0 0
        %553 = vmatmul.mubr.bf16.gmra.mrb[0].mxu0 %v377
        %v554 = vpop.f32.mrb[0].mxu0
        %v555 = vadd.f32 0.0, %v554
        %v556 = vpop.f32.mrb[0].mxu0
        %v557 = vpop.f32.mrb[0].mxu0
        %v558 = vadd.f32 0.0, %v557
        %v559 = vpop.f32.mrb[0].mxu0
        %560 = vmatprep.mubr.bf16.mxu0 0
        %561 = vmatmul.mubr.bf16.gmra.mrb[0].mxu0 %v378
        %v562 = vpop.f32.mrb[0].mxu0
        %v563 = vadd.f32 0.0, %v562
        %v564 = vpop.f32.mrb[0].mxu0
        %v565 = vpop.f32.mrb[0].mxu0
        %v566 = vadd.f32 0.0, %v565
        %v567 = vpop.f32.mrb[0].mxu0
        %568 = vmatprep.mubr.bf16.mxu0 0
        %569 = vmatmul.mubr.bf16.gmra.mrb[0].mxu0 %v379
        %v570 = vpop.f32.mrb[0].mxu0
        %v571 = vadd.f32 0.0, %v570
        %v572 = vpop.f32.mrb[0].mxu0
        %v573 = vpop.f32.mrb[0].mxu0
        %v574 = vadd.f32 0.0, %v573
        %v575 = vpop.f32.mrb[0].mxu0
        %576 = vmatprep.mubr.bf16.mxu0 0
        %577 = vmatmul.mubr.bf16.gmra.mrb[0].mxu0 %v380
        %v578 = vpop.f32.mrb[0].mxu0
        %v579 = vadd.f32 0.0, %v578
        %v580 = vpop.f32.mrb[0].mxu0
        %v581 = vpop.f32.mrb[0].mxu0
        %v582 = vadd.f32 0.0, %v581
        %v583 = vpop.f32.mrb[0].mxu0
        %584 = vmatprep.mubr.bf16.mxu0 0
        %585 = vmatmul.mubr.bf16.gmra.mrb[0].mxu0 %v381
        %v586 = vpop.f32.mrb[0].mxu0
        %v587 = vadd.f32 0.0, %v586
        %v588 = vpop.f32.mrb[0].mxu0
        %v589 = vpop.f32.mrb[0].mxu0
        %v590 = vadd.f32 0.0, %v589
        %v591 = vpop.f32.mrb[0].mxu0
        %592 = vmatprep.mubr.bf16.mxu0 0
        %593 = vmatmul.mubr.bf16.gmra.mrb[0].mxu0 %v382
        %v594 = vpop.f32.mrb[0].mxu0
        %v595 = vadd.f32 0.0, %v594
        %v596 = vpop.f32.mrb[0].mxu0
        %v597 = vpop.f32.mrb[0].mxu0
        %v598 = vadd.f32 0.0, %v597
        %v599 = vpop.f32.mrb[0].mxu0
        %600 = vmatprep.mubr.bf16.mxu0 0
        %601 = vmatmul.mubr.bf16.gmra.mrb[0].mxu0 %v383
        %v602 = vpop.f32.mrb[0].mxu0
        %v603 = vadd.f32 0.0, %v602
        %v604 = vpop.f32.mrb[0].mxu0
        %v605 = vpop.f32.mrb[0].mxu0
        %v606 = vadd.f32 0.0, %v605
        %v607 = vpop.f32.mrb[0].mxu0
        %608 = vdwg.mxu0
        %v609 = vpack.c.bf16 %v486, %v483
        %v610 = vpack.c.bf16 %v494, %v491
        %v611 = vpack.c.bf16 %v502, %v499
        %v612 = vpack.c.bf16 %v510, %v507
        %v613 = vpack.c.bf16 %v518, %v515
        %v614 = vpack.c.bf16 %v526, %v523
        %v615 = vpack.c.bf16 %v534, %v531
        %v616 = vpack.c.bf16 %v542, %v539
        %v617 = vpack.c.bf16 %v550, %v547
        %v618 = vpack.c.bf16 %v558, %v555
        %v619 = vpack.c.bf16 %v566, %v563
        %v620 = vpack.c.bf16 %v574, %v571
        %v621 = vpack.c.bf16 %v582, %v579
        %v622 = vpack.c.bf16 %v590, %v587
        %v623 = vpack.c.bf16 %v598, %v595
        %v624 = vpack.c.bf16 %v606, %v603
        %v641 = vunpack.c.l.b16 %v609
        %v642 = vunpack.c.h.b16 %v609
        %v643 = vunpack.c.l.b16 %v610
        %v644 = vunpack.c.h.b16 %v610
        %v645 = vunpack.c.l.b16 %v611
        %v646 = vunpack.c.h.b16 %v611
        %v647 = vunpack.c.l.b16 %v612
        %v648 = vunpack.c.h.b16 %v612
        %v649 = vunpack.c.l.b16 %v613
        %v650 = vunpack.c.h.b16 %v613
        %v651 = vunpack.c.l.b16 %v614
        %v652 = vunpack.c.h.b16 %v614
        %v653 = vunpack.c.l.b16 %v615
        %v654 = vunpack.c.h.b16 %v615
        %v655 = vunpack.c.l.b16 %v616
        %v656 = vunpack.c.h.b16 %v616
        %v657 = vunpack.c.l.b16 %v617
        %v658 = vunpack.c.h.b16 %v617
        %v659 = vunpack.c.l.b16 %v618
        %v660 = vunpack.c.h.b16 %v618
        %v661 = vunpack.c.l.b16 %v619
        %v662 = vunpack.c.h.b16 %v619
        %v663 = vunpack.c.l.b16 %v620
        %v664 = vunpack.c.h.b16 %v620
        %v665 = vunpack.c.l.b16 %v621
        %v666 = vunpack.c.h.b16 %v621
        %v667 = vunpack.c.l.b16 %v622
        %v668 = vunpack.c.h.b16 %v622
        %v669 = vunpack.c.l.b16 %v623
        %v670 = vunpack.c.h.b16 %v623
        %v671 = vunpack.c.l.b16 %v624
        %v672 = vunpack.c.h.b16 %v624
        %v673 = vpack.c.b16 %v641, %v641
        %v674 = vpack.c.b16 %v642, %v642
        %v675 = vpack.c.b16 %v643, %v643
        %v676 = vpack.c.b16 %v644, %v644
        %v677 = vpack.c.b16 %v645, %v645
        %v678 = vpack.c.b16 %v646, %v646
        %v679 = vpack.c.b16 %v647, %v647
        %v680 = vpack.c.b16 %v648, %v648
        %v681 = vpack.c.b16 %v649, %v649
        %v682 = vpack.c.b16 %v650, %v650
        %v683 = vpack.c.b16 %v651, %v651
        %v684 = vpack.c.b16 %v652, %v652
        %v685 = vpack.c.b16 %v653, %v653
        %v686 = vpack.c.b16 %v654, %v654
        %v687 = vpack.c.b16 %v655, %v655
        %v688 = vpack.c.b16 %v656, %v656
        %v689 = vpack.c.b16 %v657, %v657
        %v690 = vpack.c.b16 %v658, %v658
        %v691 = vpack.c.b16 %v659, %v659
        %v692 = vpack.c.b16 %v660, %v660
        %v693 = vpack.c.b16 %v661, %v661
        %v694 = vpack.c.b16 %v662, %v662
        %v695 = vpack.c.b16 %v663, %v663
        %v696 = vpack.c.b16 %v664, %v664
        %v697 = vpack.c.b16 %v665, %v665
        %v698 = vpack.c.b16 %v666, %v666
        %v699 = vpack.c.b16 %v667, %v667
        %v700 = vpack.c.b16 %v668, %v668
        %v701 = vpack.c.b16 %v669, %v669
        %v702 = vpack.c.b16 %v670, %v670
        %v703 = vpack.c.b16 %v671, %v671
        %v704 = vpack.c.b16 %v672, %v672
        %737 = vst [vmem:[%s244] sm:$0xf] %v673
        %738 = vst [vmem:[%s244 + $0x4] sm:$0xf] %v674
        %739 = vst [vmem:[%s244 + $0x8] sm:$0xf] %v675
        %740 = vst [vmem:[%s244 + $0xc] sm:$0xf] %v676
        %741 = vst [vmem:[%s244 + $0x10] sm:$0xf] %v677
        %742 = vst [vmem:[%s244 + $0x14] sm:$0xf] %v678
        %743 = vst [vmem:[%s244 + $0x18] sm:$0xf] %v679
        %744 = vst [vmem:[%s244 + $0x1c] sm:$0xf] %v680
        %745 = vst [vmem:[%s244 + $0x20] sm:$0xf] %v681
        %746 = vst [vmem:[%s244 + $0x24] sm:$0xf] %v682
        %747 = vst [vmem:[%s244 + $0x28] sm:$0xf] %v683
        %748 = vst [vmem:[%s244 + $0x2c] sm:$0xf] %v684
        %749 = vst [vmem:[%s244 + $0x30] sm:$0xf] %v685
        %750 = vst [vmem:[%s244 + $0x34] sm:$0xf] %v686
        %751 = vst [vmem:[%s244 + $0x38] sm:$0xf] %v687
        %752 = vst [vmem:[%s244 + $0x3c] sm:$0xf] %v688
        %753 = vst [vmem:[%s244 + $0x40] sm:$0xf] %v689
        %754 = vst [vmem:[%s244 + $0x44] sm:$0xf] %v690
        %755 = vst [vmem:[%s244 + $0x48] sm:$0xf] %v691
        %756 = vst [vmem:[%s244 + $0x4c] sm:$0xf] %v692
        %757 = vst [vmem:[%s244 + $0x50] sm:$0xf] %v693
        %758 = vst [vmem:[%s244 + $0x54] sm:$0xf] %v694
        %759 = vst [vmem:[%s244 + $0x58] sm:$0xf] %v695
        %760 = vst [vmem:[%s244 + $0x5c] sm:$0xf] %v696
        %761 = vst [vmem:[%s244 + $0x60] sm:$0xf] %v697
        %762 = vst [vmem:[%s244 + $0x64] sm:$0xf] %v698
        %763 = vst [vmem:[%s244 + $0x68] sm:$0xf] %v699
        %764 = vst [vmem:[%s244 + $0x6c] sm:$0xf] %v700
        %765 = vst [vmem:[%s244 + $0x70] sm:$0xf] %v701
        %766 = vst [vmem:[%s244 + $0x74] sm:$0xf] %v702
        %767 = vst [vmem:[%s244 + $0x78] sm:$0xf] %v703
        %768 = vst [vmem:[%s244 + $0x7c] sm:$0xf] %v704
        %v769 = vadd.f32 %v483, %v486
        %v770 = vadd.f32 %v769, %v491
        %v771 = vadd.f32 %v770, %v494
        %v772 = vadd.f32 %v771, %v499
        %v773 = vadd.f32 %v772, %v502
        %v774 = vadd.f32 %v773, %v507
        %v775 = vadd.f32 %v774, %v510
        %v776 = vadd.f32 %v775, %v515
        %v777 = vadd.f32 %v776, %v518
        %v778 = vadd.f32 %v777, %v523
        %v779 = vadd.f32 %v778, %v526
        %v780 = vadd.f32 %v779, %v531
        %v781 = vadd.f32 %v780, %v534
        %v782 = vadd.f32 %v781, %v539
        %v783 = vadd.f32 %v782, %v542
        %v784 = vadd.f32 %v783, %v547
        %v785 = vadd.f32 %v784, %v550
        %v786 = vadd.f32 %v785, %v555
        %v787 = vadd.f32 %v786, %v558
        %v788 = vadd.f32 %v787, %v563
        %v789 = vadd.f32 %v788, %v566
        %v790 = vadd.f32 %v789, %v571
        %v791 = vadd.f32 %v790, %v574
        %v792 = vadd.f32 %v791, %v579
        %v793 = vadd.f32 %v792, %v582
        %v794 = vadd.f32 %v793, %v587
        %v795 = vadd.f32 %v794, %v590
        %v796 = vadd.f32 %v795, %v595
        %v797 = vadd.f32 %v796, %v598
        %v798 = vadd.f32 %v797, %v603
        %v799 = vadd.f32 %v798, %v606
        %v800 = vrot.slane %v799, 4
        %v801 = vadd.f32 %v799, %v800
        %v802 = vrot.slane %v801, 2
        %v803 = vadd.f32 %v801, %v802
        %v804 = vrot.slane %v803, 1
        %v805 = vadd.f32 %v803, %v804
        %v806 = vmul.f32 %v483, %v483
        %v807 = vmul.f32 %v486, %v486
        %v808 = vmul.f32 %v491, %v491
        %v809 = vmul.f32 %v494, %v494
        %v810 = vmul.f32 %v499, %v499
        %v811 = vmul.f32 %v502, %v502
        %v812 = vmul.f32 %v507, %v507
        %v813 = vmul.f32 %v510, %v510
        %v814 = vmul.f32 %v515, %v515
        %v815 = vmul.f32 %v518, %v518
        %v816 = vmul.f32 %v523, %v523
        %v817 = vmul.f32 %v526, %v526
        %v818 = vmul.f32 %v531, %v531
        %v819 = vmul.f32 %v534, %v534
        %v820 = vmul.f32 %v539, %v539
        %v821 = vmul.f32 %v542, %v542
        %v822 = vmul.f32 %v547, %v547
        %v823 = vmul.f32 %v550, %v550
        %v824 = vmul.f32 %v555, %v555
        %v825 = vmul.f32 %v558, %v558
        %v826 = vmul.f32 %v563, %v563
        %v827 = vmul.f32 %v566, %v566
        %v828 = vmul.f32 %v571, %v571
        %v829 = vmul.f32 %v574, %v574
        %v830 = vmul.f32 %v579, %v579
        %v831 = vmul.f32 %v582, %v582
        %v832 = vmul.f32 %v587, %v587
        %v833 = vmul.f32 %v590, %v590
        %v834 = vmul.f32 %v595, %v595
        %v835 = vmul.f32 %v598, %v598
        %v836 = vmul.f32 %v603, %v603
        %v837 = vmul.f32 %v606, %v606
        %v838 = vadd.f32 %v806, %v807
        %v839 = vadd.f32 %v838, %v808
        %v840 = vadd.f32 %v839, %v809
        %v841 = vadd.f32 %v840, %v810
        %v842 = vadd.f32 %v841, %v811
        %v843 = vadd.f32 %v842, %v812
        %v844 = vadd.f32 %v843, %v813
        %v845 = vadd.f32 %v844, %v814
        %v846 = vadd.f32 %v845, %v815
        %v847 = vadd.f32 %v846, %v816
        %v848 = vadd.f32 %v847, %v817
        %v849 = vadd.f32 %v848, %v818
        %v850 = vadd.f32 %v849, %v819
        %v851 = vadd.f32 %v850, %v820
        %v852 = vadd.f32 %v851, %v821
        %v853 = vadd.f32 %v852, %v822
        %v854 = vadd.f32 %v853, %v823
        %v855 = vadd.f32 %v854, %v824
        %v856 = vadd.f32 %v855, %v825
        %v857 = vadd.f32 %v856, %v826
        %v858 = vadd.f32 %v857, %v827
        %v859 = vadd.f32 %v858, %v828
        %v860 = vadd.f32 %v859, %v829
        %v861 = vadd.f32 %v860, %v830
        %v862 = vadd.f32 %v861, %v831
        %v863 = vadd.f32 %v862, %v832
        %v864 = vadd.f32 %v863, %v833
        %v865 = vadd.f32 %v864, %v834
        %v866 = vadd.f32 %v865, %v835
        %v867 = vadd.f32 %v866, %v836
        %v868 = vadd.f32 %v867, %v837
        %v869 = vrot.slane %v868, 4
        %v870 = vadd.f32 %v868, %v869
        %v871 = vrot.slane %v870, 2
        %v872 = vadd.f32 %v870, %v871
        %v873 = vrot.slane %v872, 1
        %v874 = vadd.f32 %v872, %v873
        %v875 = vlaneseq
        %v876 = vshrl.u32 %v875, 7
        %vm877 = vcmp.eq.s32.totalorder %v876, 0
        %v878 = vsel %vm877, %v805, 0.0
        %vm879 = vcmp.eq.s32.totalorder %v876, 1
        %v880 = vsel %vm879, %v874, 0.0
        %v881 = vadd.f32 %v878, %v880
        %882 = vst [vmem:[%s251] sm:$0xff] %v881
        %s883 = sand.u32 %s110, 1
        %s884 = scalar_lea.sflag [#allocation4], %s883
        %s885 = sand.u32 %s110, 1
        %s886 = smul.addr %s885, 128
        %s887 = scalar_lea.vmem [#allocation7], %s886
        %s888 = sand.u32 %s138, 1
        %s889 = scalar_lea.sflag [#allocation9], %s888
        %s890 = sand.u32 %s138, 1
        %s891 = smul.addr %s890, 8
        %s892 = scalar_lea.vmem [#allocation8], %s891
        // Predicated region
        $region37: #{tpu_custom_call.1} parent=27 // pred_check
          %p893 = pneg %p120
        $region38: #{tpu_custom_call.1} parent=27 // pred_check_branch
          %895 = sbr.rel (%p893) target = $region40
        $region39: #{tpu_custom_call.1} parent=27 // pred_region
          %s896 = smul.u32 32, %s30
          %s898 = ssub.s32 2048, 2048
          %899 = vsyncadd %s884, %s898
          %s900 = sadd.s32 %s31, %s896
          %s901 = smul.addr %s900, 64
          %s902 = scalar_lea.hbm %s2, %s901
          %s903 = sshll.u32 %s887, 4
          %s904 = int_to_ptr.vmem [resolvable:$true] %s903
          %909 = dma.vmem_to_hbm [thread:$0]  %s904, 2048, %s902, %s884, 64, 64, 4
        $region40: #{tpu_custom_call.1} parent=27 // pred_fallthru
          _
        // Predicated region
        $region41: #{tpu_custom_call.1} parent=27 // pred_check
          %p910 = pneg %p148
        $region42: #{tpu_custom_call.1} parent=27 // pred_check_branch
          %912 = sbr.rel (%p910) target = $region44
        $region43: #{tpu_custom_call.1} parent=27 // pred_region
          %s914 = ssub.s32 128, 128
          %915 = vsyncadd %s889, %s914
          %s916 = sadd.s32 %s31, %s30
          %s917 = smul.addr %s916, 128
          %s918 = scalar_lea.hbm %s3, %s917
          %s920 = sshll.u32 %s892, 4
          %s921 = int_to_ptr.vmem [resolvable:$true] %s920
          %923 = dma.vmem_to_hbm [thread:$0]  %s921, 128, %s918, %s889
        $region44: #{tpu_custom_call.1} parent=27 // pred_fallthru
          _
      $region28: #{tpu_custom_call.1} parent=5 // pred_fallthru
        _
      %p924 = scmp.le.s32.totalorder 2, %s20
      // Predicated region
      $region45: #{tpu_custom_call.1} parent=5 // pred_check
        %p925 = pneg %p924
      $region46: #{tpu_custom_call.1} parent=5 // pred_check_branch
        %927 = sbr.rel (%p925) target = $region48
      $region47: #{tpu_custom_call.1} parent=5 // pred_region
        %s928 = ssub.s32 %s20, 2
        // Predicated region
        $region49: #{tpu_custom_call.1} parent=47 // pred_check
          %p929 = pneg %p126
        $region50: #{tpu_custom_call.1} parent=47 // pred_check_branch
          %931 = sbr.rel (%p929) target = $region52
        $region51: #{tpu_custom_call.1} parent=47 // pred_region
          %s932 = sand.u32 %s111, 1
          %s933 = scalar_lea.sflag [#allocation4], %s932
          %s934 = sand.u32 %s111, 1
          %s935 = smul.addr %s934, 128
          %s936 = scalar_lea.vmem [#allocation7], %s935
          %937 = dma.done %s933, 2048
        $region52: #{tpu_custom_call.1} parent=47 // pred_fallthru
          _
        // Predicated region
        $region53: #{tpu_custom_call.1} parent=47 // pred_check
          %p938 = pneg %p154
        $region54: #{tpu_custom_call.1} parent=47 // pred_check_branch
          %940 = sbr.rel (%p938) target = $region56
        $region55: #{tpu_custom_call.1} parent=47 // pred_region
          %s941 = sand.u32 %s139, 1
          %s942 = scalar_lea.sflag [#allocation9], %s941
          %s943 = sand.u32 %s139, 1
          %s944 = smul.addr %s943, 8
          %s945 = scalar_lea.vmem [#allocation8], %s944
          %946 = dma.done %s942, 128
        $region56: #{tpu_custom_call.1} parent=47 // pred_fallthru
          _
      $region48: #{tpu_custom_call.1} parent=5 // pred_fallthru
        _
    $region6: #{tpu_custom_call.1} parent=1 // loop_footer
      %s24 = sadd.s32 1, %s20
    $region7: #{tpu_custom_call.1} parent=1 // loop_footer_branch
      %19 = sbr.rel target = $region3
    $region8: #{tpu_custom_call.1} parent=1 // loop_exit
      _
    %947 = vsyncpa [#allocation3], 1
    %s948 = scalar_lea.sflag [#allocation3], 1
    %949 = vsyncpa %s948, 1
    %950 = vsyncpa [#allocation6], 1
    %951 = vsyncpa [#allocation4], 1
    %s952 = scalar_lea.sflag [#allocation4], 1
    %953 = vsyncpa %s952, 1
    %954 = vsyncpa [#allocation9], 1
    %s955 = scalar_lea.sflag [#allocation9], 1
    %956 = vsyncpa %s955, 1

</llo_original>
